<compile_context>
chip_gen: v6e
topology: v6e:2x2x1
jax: 0.10.0
libtpu: 0.0.40
codegen_flags: <defaults>
</compile_context>

<pallas_src>
import numpy as np
import jax
import jax.numpy as jnp
from jax.experimental import pallas as pl
from jax.experimental.pallas import tpu as pltpu

_NEG = -1.0e8        # plain Python float -> jaxpr literal (NOT a captured jnp constant)
_OUT_LANES = 128     # lane-dense output row; only lanes 0..1 / 0 carry data


def _policy_kernel(items_ref, knaps_ref, w_ref, item_mask_ref, knap_mask_t_ref,
                   sel_ref, logp_ref):
    n_items = items_ref.shape[0]
    n_knap, dim = knaps_ref.shape

    # ---------------- item head: VPU multiply + lane reduce (no MXU) ----------------
    w_item = w_ref[0:1, :]                                                 # (1, dim+1)
    item_logits = jnp.sum(items_ref[...] * w_item, axis=1, keepdims=True)  # (n_items, 1)
    item_logits = jnp.where(item_mask_ref[...] > 0.0, item_logits, _NEG)

    idx_i = jax.lax.broadcasted_iota(jnp.int32, (n_items, 1), 0)
    m_i = jnp.max(item_logits, axis=0, keepdims=True)                      # (1, 1)
    sel_i = jnp.min(jnp.where(item_logits == m_i, idx_i, n_items),
                    axis=0, keepdims=True)                                 # first argmax
    # logit at the argmax IS m_i  ->  logp_i = m_i - lse_i = -log(sum exp(x - m_i))
    logp_i = -jnp.log(jnp.sum(jnp.exp(item_logits - m_i), axis=0, keepdims=True))

    # ---------------- knapsack head ----------------
    w_knap = w_ref[1:2, 0:dim]                                             # (1, dim)
    knap_logits = jnp.sum(knaps_ref[...] * w_knap, axis=1, keepdims=True)  # (n_knap, 1)

    # allocable-knapsack column of the selected item: VPU select + lane reduce
    # (replaces the one-hot MXU matmul that used to sit after the item argmax).
    idx_cols = jax.lax.broadcasted_iota(jnp.int32, (n_knap, n_items), 1)
    mask_col = jnp.sum(jnp.where(idx_cols == sel_i, knap_mask_t_ref[...], 0.0),
                       axis=1, keepdims=True)                              # (n_knap, 1)
    knap_logits = jnp.where(mask_col > 0.0, knap_logits, _NEG)

    idx_k = jax.lax.broadcasted_iota(jnp.int32, (n_knap, 1), 0)
    m_k = jnp.max(knap_logits, axis=0, keepdims=True)
    sel_k = jnp.min(jnp.where(knap_logits == m_k, idx_k, n_knap),
                    axis=0, keepdims=True)
    logp_k = -jnp.log(jnp.sum(jnp.exp(knap_logits - m_k), axis=0, keepdims=True))

    logp = logp_i + logp_k                                                 # (1, 1)

    # ---------------- consolidated, lane-dense outputs (full-width stores) ----------------
    lane = jax.lax.broadcasted_iota(jnp.int32, sel_ref.shape, 1)           # (1, 128)
    sel_ref[...] = jnp.where(lane == 0, sel_i, jnp.where(lane == 1, sel_k, 0))
    logp_ref[...] = jnp.where(lane == 0, logp, 0.0)


def _policy_call(items, knapsacks, w_packed, item_mask_col, knap_mask_t):
    return pl.pallas_call(
        _policy_kernel,
        out_shape=(
            jax.ShapeDtypeStruct((1, _OUT_LANES), jnp.int32),    # lanes 0/1: item / knapsack idx
            jax.ShapeDtypeStruct((1, _OUT_LANES), jnp.float32),  # lane 0: log prob (item + knap)
        ),
        in_specs=[pl.BlockSpec(memory_space=pltpu.MemorySpace.VMEM) for _ in range(5)],
        out_specs=(pl.BlockSpec(memory_space=pltpu.MemorySpace.VMEM),
                   pl.BlockSpec(memory_space=pltpu.MemorySpace.VMEM)),
    )(items, knapsacks, w_packed, item_mask_col, knap_mask_t)


@jax.jit
def linear_policy_forward(items, knapsacks, w_packed, item_mask_col, knap_mask_t):
    """Argmax path of Linear_Policy.forward (biases dropped: softmax/argmax invariant).

    items:         (n_items, dim + 1)   natural layout
    knapsacks:     (n_knap,  dim)       natural layout
    w_packed:      (2, dim + 1)         row 0 = item weights, row 1 = [knap weights, 0]
    item_mask_col: (n_items, 1)         1.0 -> index is in allocable_items
    knap_mask_t:   (n_knap, n_items)    1.0 -> knapsack (row) allocable for item (col)
    Returns (selected_item i32, selected_knapsack i32, log_prob f32).
    """
    sel, logp = _policy_call(items, knapsacks, w_packed, item_mask_col, knap_mask_t)
    return sel[0, 0], sel[0, 1], logp[0, 0]


def pack_weights(item_w, knap_w):
    """One-time parameter prep: pack both 1-output Linear weight rows into (2, dim+1)."""
    d1 = item_w.shape[-1]
    w = np.zeros((2, d1), np.float32)
    w[0, :] = np.asarray(item_w, np.float32).reshape(-1)
    w[1, :knap_w.shape[-1]] = np.asarray(knap_w, np.float32).reshape(-1)
    return jnp.asarray(w)


def build_masks(n_items, n_knap, allocable_items, allocable_knapsacks):
    """Host-side bookkeeping (the PyTorch module builds masks in a Python loop too).

    Emits the masks directly in kernel layout: item mask as a (n_items, 1) column and
    the allocable-knapsack mask knapsack-major (n_knap, n_items), so the wrapper does
    no per-call relayout of data tensors.
    """
    item_mask = np.zeros((n_items, 1), np.float32)
    for i in allocable_items:
        item_mask[i, 0] = 1.0
    knap_mask_t = np.zeros((n_knap, n_items), np.float32)
    for i, ks in enumerate(allocable_knapsacks):
        for k in ks:
            knap_mask_t[k, i] = 1.0
    return jnp.asarray(item_mask), jnp.asarray(knap_mask_t)


if __name__ == "__main__":
    dimension, n_items, n_knap = 16, 8, 4

    key = jax.random.PRNGKey(0)
    k_items, k_knaps, k_wi, k_wk, k_bi, k_bk = jax.random.split(key, 6)

    items = jax.random.normal(k_items, (n_items, dimension + 1), jnp.float32)
    knapsacks = jax.random.normal(k_knaps, (n_knap, dimension), jnp.float32)

    # item_layer: nn.Linear(dim+1, 1), weights ~ U(0, 0.001)
    item_w = jax.random.uniform(k_wi, (1, dimension + 1), jnp.float32, 0.0, 0.001)
    # knapsack_layer: nn.Linear(dim, 1), weights ~ N(0, 0.001)
    knap_w = 0.001 * jax.random.normal(k_wk, (1, dimension), jnp.float32)
    # default nn.Linear bias init (used by the reference only; the kernel drops biases
    # because softmax/argmax are invariant to a uniform logit shift)
    bi = 1.0 / ((dimension + 1) ** 0.5)
    bk = 1.0 / (dimension ** 0.5)
    item_b = jax.random.uniform(k_bi, (1,), jnp.float32, -bi, bi)
    knap_b = jax.random.uniform(k_bk, (1,), jnp.float32, -bk, bk)

    w_packed = pack_weights(item_w, knap_w)

    # allocable_items = {0, 2, 3, 5, 7}; allocable_knapsacks[i] listed per item
    allocable_items = [0, 2, 3, 5, 7]
    allocable_knapsacks = [[0, 1], [1, 2], [0, 3], [2, 3],
                           [0, 1, 2, 3], [1, 3], [0, 2], [0, 1, 2, 3]]
    item_mask_col, knap_mask_t = build_masks(n_items, n_knap,
                                             allocable_items, allocable_knapsacks)

    sel_i, sel_k, logp = linear_policy_forward(items, knapsacks, w_packed,
                                               item_mask_col, knap_mask_t)
    sel_i, sel_k, logp = jax.block_until_ready((sel_i, sel_k, logp))

    # ---- plain-JAX reference (same math as the PyTorch forward, argmax=True, WITH biases) ----
    item_mask_1d = item_mask_col.reshape(-1)
    item_logits = items @ item_w.reshape(-1) + item_b[0]
    item_logits = jnp.where(item_mask_1d > 0, item_logits, _NEG)
    ref_i = int(jnp.argmax(item_logits))
    ref_lp_i = jax.nn.log_softmax(item_logits)[ref_i]

    knap_logits = knapsacks @ knap_w.reshape(-1) + knap_b[0]
    knap_logits = jnp.where(knap_mask_t[:, ref_i] > 0, knap_logits, _NEG)
    ref_k = int(jnp.argmax(knap_logits))
    ref_lp_k = jax.nn.log_softmax(knap_logits)[ref_k]
    ref_lp = ref_lp_i + ref_lp_k

    assert int(sel_i) == ref_i, (int(sel_i), ref_i)
    assert int(sel_k) == ref_k, (int(sel_k), ref_k)
    assert jnp.allclose(logp, ref_lp, atol=1e-5, rtol=1e-5), (float(logp), float(ref_lp))

    print("KERNEL_OK")
</pallas_src>

<mosaic_0001>
module attributes {stable_mosaic.version = 11 : i64} {
  func.func @_policy_kernel(%arg0: memref<8x17xf32, #tpu.memory_space<vmem>>, %arg1: memref<4x16xf32, #tpu.memory_space<vmem>>, %arg2: memref<2x17xf32, #tpu.memory_space<vmem>>, %arg3: memref<8x1xf32, #tpu.memory_space<vmem>>, %arg4: memref<4x8xf32, #tpu.memory_space<vmem>>, %arg5: memref<1x128xi32, #tpu.memory_space<vmem>>, %arg6: memref<1x128xf32, #tpu.memory_space<vmem>>) attributes {dimension_semantics = [], scalar_prefetch = 0 : i64, scratch_operands = 0 : i64, tpu.core_type = #tpu.core_type<tc>} {
    %c0 = arith.constant 0 : index
    %c0_0 = arith.constant 0 : index
    %0 = vector.load %arg2[%c0, %c0_0] : memref<2x17xf32, #tpu.memory_space<vmem>>, vector<1x17xf32>
    %c0_1 = arith.constant 0 : index
    %c0_2 = arith.constant 0 : index
    %1 = vector.load %arg0[%c0_1, %c0_2] : memref<8x17xf32, #tpu.memory_space<vmem>>, vector<8x17xf32>
    %2 = vector.broadcast %0 : vector<1x17xf32> to vector<8x17xf32>
    %3 = arith.mulf %1, %2 : vector<8x17xf32>
    %cst = arith.constant dense<0.000000e+00> : vector<8xf32>
    %4 = vector.multi_reduction <add>, %3, %cst [1] : vector<8x17xf32> to vector<8xf32>
    %5 = vector.shape_cast %4 : vector<8xf32> to vector<8x1xf32>
    %c0_3 = arith.constant 0 : index
    %c0_4 = arith.constant 0 : index
    %6 = vector.load %arg3[%c0_3, %c0_4] : memref<8x1xf32, #tpu.memory_space<vmem>>, vector<8x1xf32>
    %cst_5 = arith.constant 0.000000e+00 : f32
    %7 = vector.broadcast %cst_5 : f32 to vector<8x1xf32>
    %8 = arith.cmpf ogt, %6, %7 : vector<8x1xf32>
    %cst_6 = arith.constant -1.000000e+08 : f32
    %9 = vector.broadcast %cst_6 : f32 to vector<8x1xf32>
    %10 = arith.select %8, %5, %9 : vector<8x1xi1>, vector<8x1xf32>
    %11 = tpu.iota {dimensions = array<i32: 0>} : vector<8x1xi32>
    %cst_7 = arith.constant dense<0xFF800000> : vector<1xf32>
    %12 = vector.multi_reduction <maximumf>, %10, %cst_7 [0] : vector<8x1xf32> to vector<1xf32>
    %13 = vector.shape_cast %12 : vector<1xf32> to vector<1x1xf32>
    %14 = vector.broadcast %13 : vector<1x1xf32> to vector<8x1xf32>
    %15 = arith.cmpf oeq, %10, %14 : vector<8x1xf32>
    %c8_i32 = arith.constant 8 : i32
    %16 = vector.broadcast %c8_i32 : i32 to vector<8x1xi32>
    %17 = arith.select %15, %11, %16 : vector<8x1xi1>, vector<8x1xi32>
    %cst_8 = arith.constant dense<2147483647> : vector<1xi32>
    %18 = vector.multi_reduction <minsi>, %17, %cst_8 [0] : vector<8x1xi32> to vector<1xi32>
    %19 = vector.shape_cast %18 : vector<1xi32> to vector<1x1xi32>
    %20 = vector.broadcast %13 : vector<1x1xf32> to vector<8x1xf32>
    %21 = arith.subf %10, %20 : vector<8x1xf32>
    %22 = math.exp %21 : vector<8x1xf32>
    %cst_9 = arith.constant dense<0.000000e+00> : vector<1xf32>
    %23 = vector.multi_reduction <add>, %22, %cst_9 [0] : vector<8x1xf32> to vector<1xf32>
    %24 = vector.shape_cast %23 : vector<1xf32> to vector<1x1xf32>
    %25 = math.log %24 : vector<1x1xf32>
    %cst_10 = arith.constant 0.000000e+00 : f32
    %26 = vector.broadcast %cst_10 : f32 to vector<1x1xf32>
    %27 = arith.subf %26, %25 : vector<1x1xf32>
    %c1 = arith.constant 1 : index
    %c0_11 = arith.constant 0 : index
    %28 = vector.load %arg2[%c1, %c0_11] : memref<2x17xf32, #tpu.memory_space<vmem>>, vector<1x16xf32>
    %c0_12 = arith.constant 0 : index
    %c0_13 = arith.constant 0 : index
    %29 = vector.load %arg1[%c0_12, %c0_13] : memref<4x16xf32, #tpu.memory_space<vmem>>, vector<4x16xf32>
    %30 = vector.broadcast %28 : vector<1x16xf32> to vector<4x16xf32>
    %31 = arith.mulf %29, %30 : vector<4x16xf32>
    %cst_14 = arith.constant dense<0.000000e+00> : vector<4xf32>
    %32 = vector.multi_reduction <add>, %31, %cst_14 [1] : vector<4x16xf32> to vector<4xf32>
    %33 = vector.shape_cast %32 : vector<4xf32> to vector<4x1xf32>
    %34 = tpu.iota {dimensions = array<i32: 1>} : vector<4x8xi32>
    %35 = vector.broadcast %19 : vector<1x1xi32> to vector<4x8xi32>
    %36 = arith.cmpi eq, %34, %35 : vector<4x8xi32>
    %c0_15 = arith.constant 0 : index
    %c0_16 = arith.constant 0 : index
    %37 = vector.load %arg4[%c0_15, %c0_16] : memref<4x8xf32, #tpu.memory_space<vmem>>, vector<4x8xf32>
    %cst_17 = arith.constant 0.000000e+00 : f32
    %38 = vector.broadcast %cst_17 : f32 to vector<4x8xf32>
    %39 = arith.select %36, %37, %38 : vector<4x8xi1>, vector<4x8xf32>
    %cst_18 = arith.constant dense<0.000000e+00> : vector<4xf32>
    %40 = vector.multi_reduction <add>, %39, %cst_18 [1] : vector<4x8xf32> to vector<4xf32>
    %41 = vector.shape_cast %40 : vector<4xf32> to vector<4x1xf32>
    %cst_19 = arith.constant 0.000000e+00 : f32
    %42 = vector.broadcast %cst_19 : f32 to vector<4x1xf32>
    %43 = arith.cmpf ogt, %41, %42 : vector<4x1xf32>
    %cst_20 = arith.constant -1.000000e+08 : f32
    %44 = vector.broadcast %cst_20 : f32 to vector<4x1xf32>
    %45 = arith.select %43, %33, %44 : vector<4x1xi1>, vector<4x1xf32>
    %46 = tpu.iota {dimensions = array<i32: 0>} : vector<4x1xi32>
    %cst_21 = arith.constant dense<0xFF800000> : vector<1xf32>
    %47 = vector.multi_reduction <maximumf>, %45, %cst_21 [0] : vector<4x1xf32> to vector<1xf32>
    %48 = vector.shape_cast %47 : vector<1xf32> to vector<1x1xf32>
    %49 = vector.broadcast %48 : vector<1x1xf32> to vector<4x1xf32>
    %50 = arith.cmpf oeq, %45, %49 : vector<4x1xf32>
    %c4_i32 = arith.constant 4 : i32
    %51 = vector.broadcast %c4_i32 : i32 to vector<4x1xi32>
    %52 = arith.select %50, %46, %51 : vector<4x1xi1>, vector<4x1xi32>
    %cst_22 = arith.constant dense<2147483647> : vector<1xi32>
    %53 = vector.multi_reduction <minsi>, %52, %cst_22 [0] : vector<4x1xi32> to vector<1xi32>
    %54 = vector.shape_cast %53 : vector<1xi32> to vector<1x1xi32>
    %55 = vector.broadcast %48 : vector<1x1xf32> to vector<4x1xf32>
    %56 = arith.subf %45, %55 : vector<4x1xf32>
    %57 = math.exp %56 : vector<4x1xf32>
    %cst_23 = arith.constant dense<0.000000e+00> : vector<1xf32>
    %58 = vector.multi_reduction <add>, %57, %cst_23 [0] : vector<4x1xf32> to vector<1xf32>
    %59 = vector.shape_cast %58 : vector<1xf32> to vector<1x1xf32>
    %60 = math.log %59 : vector<1x1xf32>
    %cst_24 = arith.constant 0.000000e+00 : f32
    %61 = vector.broadcast %cst_24 : f32 to vector<1x1xf32>
    %62 = arith.subf %61, %60 : vector<1x1xf32>
    %63 = arith.addf %27, %62 : vector<1x1xf32>
    %64 = tpu.iota {dimensions = array<i32: 1>} : vector<1x128xi32>
    %c0_i32 = arith.constant 0 : i32
    %65 = vector.broadcast %c0_i32 : i32 to vector<1x128xi32>
    %66 = arith.cmpi eq, %64, %65 : vector<1x128xi32>
    %c1_i32 = arith.constant 1 : i32
    %67 = vector.broadcast %c1_i32 : i32 to vector<1x128xi32>
    %68 = arith.cmpi eq, %64, %67 : vector<1x128xi32>
    %c0_i32_25 = arith.constant 0 : i32
    %69 = vector.shape_cast %54 : vector<1x1xi32> to vector<1x1xi32>
    %70 = vector.broadcast %69 : vector<1x1xi32> to vector<1x128xi32>
    %71 = vector.broadcast %c0_i32_25 : i32 to vector<1x128xi32>
    %72 = arith.select %68, %70, %71 : vector<1x128xi1>, vector<1x128xi32>
    %73 = vector.shape_cast %19 : vector<1x1xi32> to vector<1x1xi32>
    %74 = vector.broadcast %73 : vector<1x1xi32> to vector<1x128xi32>
    %75 = arith.select %66, %74, %72 : vector<1x128xi1>, vector<1x128xi32>
    %c0_26 = arith.constant 0 : index
    %c0_27 = arith.constant 0 : index
    %76 = vector.load %arg5[%c0_26, %c0_27] : memref<1x128xi32, #tpu.memory_space<vmem>>, vector<1x128xi32>
    tpu.vector_store %arg5[%c0_26, %c0_27], %75 {strides = array<i32>} : memref<1x128xi32, #tpu.memory_space<vmem>>, vector<1x128xi32>,
    %c0_i32_28 = arith.constant 0 : i32
    %77 = vector.broadcast %c0_i32_28 : i32 to vector<1x128xi32>
    %78 = arith.cmpi eq, %64, %77 : vector<1x128xi32>
    %cst_29 = arith.constant 0.000000e+00 : f32
    %79 = vector.shape_cast %63 : vector<1x1xf32> to vector<1x1xf32>
    %80 = vector.broadcast %79 : vector<1x1xf32> to vector<1x128xf32>
    %81 = vector.broadcast %cst_29 : f32 to vector<1x128xf32>
    %82 = arith.select %78, %80, %81 : vector<1x128xi1>, vector<1x128xf32>
    %c0_30 = arith.constant 0 : index
    %c0_31 = arith.constant 0 : index
    %83 = vector.load %arg6[%c0_30, %c0_31] : memref<1x128xf32, #tpu.memory_space<vmem>>, vector<1x128xf32>
    tpu.vector_store %arg6[%c0_30, %c0_31], %82 {strides = array<i32>} : memref<1x128xf32, #tpu.memory_space<vmem>>, vector<1x128xf32>,
    return
  }
}

</mosaic_0001>

<llo_original>
// kernel: linear_policy_forward.1
$region0: #{linear_policy_forward.1}
  #allocation0 [shape = 'u32[]', space=smem, size = 0x4, offset = 0x4, fixed_abs, tag = 'smem constant byte address 0x4 - core index']
  #allocation1 [shape = 'u32[144,128]{1,0:T(1,128)}', space=vmem, size = 0x12000, scoped, tag = 'internal scratch']
  %s0 = inlined_call_operand.vmem [shape: f32[8,17], index: 0, kind: input, shape index: {}]
  %s1 = inlined_call_operand.hbm [shape: f32[4,16], index: 1, kind: input, shape index: {}]
  %s2 = inlined_call_operand.hbm [shape: f32[2,17], index: 2, kind: input, shape index: {}]
  %s3 = inlined_call_operand.vmem [shape: f32[8,1], index: 3, kind: input, shape index: {}]
  %s4 = inlined_call_operand.vmem [shape: f32[4,8], index: 4, kind: input, shape index: {}]
  %s5 = inlined_call_operand.vmem [shape: s32[1,128], index: 5, kind: output, shape index: {0}]
  %s6 = inlined_call_operand.hbm [shape: f32[1,128], index: 6, kind: output, shape index: {1}]
  %7 = xla_tuple %s5, %s6
  %s8 = sld [smem:[#allocation0]]
  $region46: #{linear_policy_forward.1} parent=0
    _
  %s10 = ssub.s32 1, %s8
  %s11 = scalar_select 0, %s10, %s8
  $region1: #{linear_policy_forward.1} parent=0
    #allocation2 [shape = 'u8[2048]{0}', space=vmem, size = 0x800, scoped, tag = 'input window, operand 1, single buffered']
    #allocation3 [shape = 's32[1]{0}', space=sflag, size = 0x4, scoped, tag = 'scoped memory for linear_policy_forward.1']
    #allocation4 [shape = 's32[1]{0}', space=sflag, size = 0x4, scoped, tag = 'scoped memory for linear_policy_forward.1']
    #allocation5 [shape = 'u8[1024]{0}', space=vmem, size = 0x400, scoped, tag = 'input window, operand 2, single buffered']
    #allocation6 [shape = 's32[1]{0}', space=sflag, size = 0x4, scoped, tag = 'scoped memory for linear_policy_forward.1']
    #allocation7 [shape = 'u8[512]{0}', space=vmem, size = 0x400, scoped, tag = 'output window, operand 1, single buffered']
    %12 = vsyncpa [#allocation3], 0
    %13 = vsyncpa [#allocation6], 0
    %14 = vsyncpa [#allocation4], 0
    // Predicated region
    $region2: #{linear_policy_forward.1} parent=1 // pred_check
      _
    $region3: #{linear_policy_forward.1} parent=1 // pred_check_branch
      %16 = sbr.rel (0) target = $region5
    $region4: #{linear_policy_forward.1} parent=1 // pred_region
      _
    $region5: #{linear_policy_forward.1} parent=1 // pred_fallthru
      _
    // Predicated region
    $region6: #{linear_policy_forward.1} parent=1 // pred_check
      _
    $region7: #{linear_policy_forward.1} parent=1 // pred_check_branch
      %18 = sbr.rel (0) target = $region9
    $region8: #{linear_policy_forward.1} parent=1 // pred_region
      %s20 = ssub.s32 64, 64
      %21 = vsyncadd [#allocation3], %s20
      %s23 = sshll.u32 [#allocation2], 4
      %s24 = int_to_ptr.vmem [resolvable:$true] %s23
      %26 = dma.hbm_to_vmem [thread:$0]  %s1, 64, %s24, [#allocation3]
    $region9: #{linear_policy_forward.1} parent=1 // pred_fallthru
      _
    // Predicated region
    $region10: #{linear_policy_forward.1} parent=1 // pred_check
      _
    $region11: #{linear_policy_forward.1} parent=1 // pred_check_branch
      %28 = sbr.rel (0) target = $region13
    $region12: #{linear_policy_forward.1} parent=1 // pred_region
      %s30 = ssub.s32 32, 32
      %31 = vsyncadd [#allocation6], %s30
      %s33 = sshll.u32 [#allocation5], 4
      %s34 = int_to_ptr.vmem [resolvable:$true] %s33
      %36 = dma.hbm_to_vmem [thread:$0]  %s2, 32, %s34, [#allocation6]
    $region13: #{linear_policy_forward.1} parent=1 // pred_fallthru
      _
    // Predicated region
    $region14: #{linear_policy_forward.1} parent=1 // pred_check
      _
    $region15: #{linear_policy_forward.1} parent=1 // pred_check_branch
      %38 = sbr.rel (0) target = $region17
    $region16: #{linear_policy_forward.1} parent=1 // pred_region
      _
    $region17: #{linear_policy_forward.1} parent=1 // pred_fallthru
      _
    // Predicated region
    $region18: #{linear_policy_forward.1} parent=1 // pred_check
      _
    $region19: #{linear_policy_forward.1} parent=1 // pred_check_branch
      %40 = sbr.rel (0) target = $region21
    $region20: #{linear_policy_forward.1} parent=1 // pred_region
      _
    $region21: #{linear_policy_forward.1} parent=1 // pred_fallthru
      _
    // Predicated region
    $region22: #{linear_policy_forward.1} parent=1 // pred_check
      _
    $region23: #{linear_policy_forward.1} parent=1 // pred_check_branch
      %42 = sbr.rel (0) target = $region25
    $region24: #{linear_policy_forward.1} parent=1 // pred_region
      %43 = dma.done [#allocation3], 64
    $region25: #{linear_policy_forward.1} parent=1 // pred_fallthru
      _
    // Predicated region
    $region26: #{linear_policy_forward.1} parent=1 // pred_check
      _
    $region27: #{linear_policy_forward.1} parent=1 // pred_check_branch
      %45 = sbr.rel (0) target = $region29
    $region28: #{linear_policy_forward.1} parent=1 // pred_region
      %46 = dma.done [#allocation6], 32
    $region29: #{linear_policy_forward.1} parent=1 // pred_fallthru
      _
    %v47 = vld [vmem:[#allocation5] sm:$0x1]
    %v48 = vld [vmem:[%s0] sm:$0xff]
    %v49 = vlaneseq
    %v50 = vshrl.u32 %v49, 7
    %v51 = vsub.s32 0, %v50
    %v52 = vrot.slane %v47, %v51
    %v53 = vmul.f32 %v48, %v52
    %vm54 = vcmask 138240
    %v55 = vsel %vm54, %v53, 0.0
    %56 = vadd.xlane.f32.xlu0 %v55
    %v57 = vpop.xlane.xlu0 %56
    %v58 = vld [vmem:[%s3] sm:$0xff]
    %vm59 = vcmp.gt.f32.partialorder %v58, 0.0
    %v60 = vsel %vm59, %v57, -1e+08
    %v61 = vlaneseq
    %v62 = vshrl.u32 %v61, 7
    %vm63 = vcmask 7168
    %v64 = vsel %vm63, %v60, -inf
    %v65 = vrot.slane %v64, 4
    %v66 = vmax.f32 %v64, %v65
    %v67 = vrot.slane %v66, 2
    %v68 = vmax.f32 %v66, %v67
    %v69 = vrot.slane %v68, 1
    %v70 = vmax.f32 %v68, %v69
    %vm71 = vcmp.eq.f32.partialorder %v60, %v70
    %v72 = vsel %vm71, %v62, 8
    %v73 = vsel %vm63, %v72, 2147483647
    %v74 = vrot.slane %v73, 4
    %vm75 = vcmp.lt.s32.totalorder %v73, %v74
    %v76 = vsel %vm75, %v73, %v74
    %v77 = vrot.slane %v76, 2
    %vm78 = vcmp.lt.s32.totalorder %v76, %v77
    %v79 = vsel %vm78, %v76, %v77
    %v80 = vrot.slane %v79, 1
    %vm81 = vcmp.lt.s32.totalorder %v79, %v80
    %v82 = vsel %vm81, %v79, %v80
    %v83 = vsub.f32 %v60, %v70
    %v84 = vmul.f32 %v83, 1.442695
    %v85 = vpow.pop %v84
    %v86 = vsel %vm63, %v85, 0.0
    %v87 = vrot.slane %v86, 4
    %v88 = vadd.f32 %v86, %v87
    %v89 = vrot.slane %v88, 2
    %v90 = vadd.f32 %v88, %v89
    %v91 = vrot.slane %v90, 1
    %v92 = vadd.f32 %v90, %v91
    %v93 = vlog2.pop %v92
    %v94 = vmul.f32 %v93, 0.6931472
    %v95 = vsub.f32 0.0, %v94
    %v96 = vld [vmem:[#allocation5 + $0x1] sm:$0x1]
    %v97 = vld [vmem:[#allocation2] sm:$0xf]
    %v98 = vlaneseq
    %v99 = vshrl.u32 %v98, 7
    %v100 = vsub.s32 0, %v99
    %v101 = vrot.slane %v96, %v100
    %v102 = vmul.f32 %v97, %v101
    %vm103 = vcmask 125952
    %v104 = vsel %vm103, %v102, 0.0
    %105 = vadd.xlane.f32.xlu0 %v104
    %v106 = vpop.xlane.xlu0 %105
    %v107 = vlaneseq
    %v108 = vand.u32 %v107, 127
    %109 = vset.pattern.permute.xlu0 0
    %110 = vperm.xlu0 %109, %v82
    %v111 = vpop.permute.xlu0 %110
    %vm112 = vcmp.eq.s32.totalorder %v108, %v111
    %v113 = vld [vmem:[%s4] sm:$0xf]
    %v114 = vsel %vm112, %v113, 0.0
    %vm115 = vcmask 60416
    %v116 = vsel %vm115, %v114, 0.0
    %117 = vadd.xlane.f32.xlu0 %v116
    %v118 = vpop.xlane.xlu0 %117
    %vm119 = vcmp.gt.f32.partialorder %v118, 0.0
    %v120 = vsel %vm119, %v106, -1e+08
    %vm121 = vcmask 1043456
    %v122 = vsel %vm121, %v120, -inf
    %v123 = vrot.slane %v122, 4
    %v124 = vmax.f32 %v122, %v123
    %v125 = vrot.slane %v124, 2
    %v126 = vmax.f32 %v124, %v125
    %v127 = vrot.slane %v126, 1
    %v128 = vmax.f32 %v126, %v127
    %vm129 = vcmp.eq.f32.partialorder %v120, %v128
    %v130 = vsel %vm129, %v62, 4
    %v131 = vsel %vm121, %v130, 2147483647
    %v132 = vrot.slane %v131, 4
    %vm133 = vcmp.lt.s32.totalorder %v131, %v132
    %v134 = vsel %vm133, %v131, %v132
    %v135 = vrot.slane %v134, 2
    %vm136 = vcmp.lt.s32.totalorder %v134, %v135
    %v137 = vsel %vm136, %v134, %v135
    %v138 = vrot.slane %v137, 1
    %vm139 = vcmp.lt.s32.totalorder %v137, %v138
    %v140 = vsel %vm139, %v137, %v138
    %v141 = vsub.f32 %v120, %v128
    %v142 = vmul.f32 %v141, 1.442695
    %v143 = vpow.pop %v142
    %v144 = vsel %vm121, %v143, 0.0
    %v145 = vrot.slane %v144, 4
    %v146 = vadd.f32 %v144, %v145
    %v147 = vrot.slane %v146, 2
    %v148 = vadd.f32 %v146, %v147
    %v149 = vrot.slane %v148, 1
    %v150 = vadd.f32 %v148, %v149
    %v151 = vlog2.pop %v150
    %v152 = vmul.f32 %v151, 0.6931472
    %v153 = vsub.f32 0.0, %v152
    %v154 = vadd.f32 %v95, %v153
    %vm155 = vcmp.eq.s32.totalorder %v108, 0
    %vm156 = vcmp.eq.s32.totalorder %v108, 1
    %v157 = vsel %vm156, %v140, 0
    %v158 = vsel %vm155, %v111, %v157
    %159 = vst [vmem:[%s5] sm:$0x1] %v158
    %161 = vset.pattern.permute.xlu0 0
    %162 = vperm.xlu0 %161, %v154
    %v163 = vpop.permute.xlu0 %162
    %v165 = vsel %vm155, %v163, 0.0
    %166 = vst [vmem:[#allocation7] sm:$0x1] %v165
    // Predicated region
    $region30: #{linear_policy_forward.1} parent=1 // pred_check
      _
    $region31: #{linear_policy_forward.1} parent=1 // pred_check_branch
      %168 = sbr.rel (0) target = $region33
    $region32: #{linear_policy_forward.1} parent=1 // pred_region
      _
    $region33: #{linear_policy_forward.1} parent=1 // pred_fallthru
      _
    // Predicated region
    $region34: #{linear_policy_forward.1} parent=1 // pred_check
      _
    $region35: #{linear_policy_forward.1} parent=1 // pred_check_branch
      %170 = sbr.rel (0) target = $region37
    $region36: #{linear_policy_forward.1} parent=1 // pred_region
      %s172 = ssub.s32 16, 16
      %173 = vsyncadd [#allocation4], %s172
      %s175 = sshll.u32 [#allocation7], 4
      %s176 = int_to_ptr.vmem [resolvable:$true] %s175
      %178 = dma.vmem_to_hbm [thread:$0]  %s176, 16, %s6, [#allocation4]
    $region37: #{linear_policy_forward.1} parent=1 // pred_fallthru
      _
    // Predicated region
    $region38: #{linear_policy_forward.1} parent=1 // pred_check
      _
    $region39: #{linear_policy_forward.1} parent=1 // pred_check_branch
      %180 = sbr.rel (0) target = $region41
    $region40: #{linear_policy_forward.1} parent=1 // pred_region
      _
    $region41: #{linear_policy_forward.1} parent=1 // pred_fallthru
      _
    // Predicated region
    $region42: #{linear_policy_forward.1} parent=1 // pred_check
      _
    $region43: #{linear_policy_forward.1} parent=1 // pred_check_branch
      %182 = sbr.rel (0) target = $region45
    $region44: #{linear_policy_forward.1} parent=1 // pred_region
      %183 = dma.done [#allocation4], 16
    $region45: #{linear_policy_forward.1} parent=1 // pred_fallthru
      _
    %184 = vsyncpa [#allocation3], 1
    %185 = vsyncpa [#allocation6], 1
    %186 = vsyncpa [#allocation4], 1

</llo_original>
